<compile_context>
chip_gen: v5e
topology: v5e:2x2
jax: 0.10.0
libtpu: 0.0.40
codegen_flags: <defaults>
</compile_context>

<pallas_src>
import functools

import jax
import jax.numpy as jnp
import numpy as np
from jax.experimental import pallas as pl
from jax.experimental.pallas import tpu as pltpu


# ----------------------------------------------------------------------------
# Fused Pallas kernel (all layers + linear head, single invocation, grid=())
# ----------------------------------------------------------------------------
def _make_fused_kernel(num_layers, hidden):
    L, H = num_layers, hidden

    def kernel(x_ref, state_ref, w_ref, b_ref, lin_w_ref, lin_b_ref,
               out_ref, state_out_ref):
        B = x_ref.shape[0]
        inp = x_ref[...]                     # (B, H); layer-0 x zero-padded to H

        # Hoisted activation helpers — computed once, reused by every layer.
        lane = jax.lax.broadcasted_iota(jnp.int32, (B, 4 * H), 1)
        is_g = (lane >= 2 * H) & (lane < 3 * H)
        one = jnp.float32(1.0)
        half = jnp.float32(0.5)
        arg_scale = jnp.where(is_g, one, half)              # tanh(z) vs tanh(z/2)
        out_scale = jnp.where(is_g, one, half)
        out_bias = jnp.where(is_g, jnp.float32(0.0), half)

        # Statically unrolled over layers: h/c stay in vregs/VMEM between
        # layers — no HBM round-trips.
        for l in range(L):
            h = state_ref[0, l]              # (B, H)
            c = state_ref[1, l]              # (B, H)
            w = w_ref[l]                     # (2H, 4H): rows [0,H)=Wx, [H,2H)=Wh

            gates = (
                jnp.dot(inp, w[:H], preferred_element_type=jnp.float32)
                + jnp.dot(h, w[H:], preferred_element_type=jnp.float32)
                + b_ref[l]
            )

            # Single tanh over the full (B, 4H) gate tile:
            #   sigmoid(z) = 0.5 * tanh(z / 2) + 0.5  on i/f/o lanes,
            #   tanh(z)                               on g lanes.
            t = jnp.tanh(gates * arg_scale)
            act = t * out_scale + out_bias

            i_g = act[:, 0 * H:1 * H]
            f_g = act[:, 1 * H:2 * H]
            g_g = act[:, 2 * H:3 * H]
            o_g = act[:, 3 * H:4 * H]

            c_new = f_g * c + i_g * g_g
            h_new = o_g * jnp.tanh(c_new)

            # Lane-dense state slab: [h0 | .. | h_{L-1} | c0 | .. | c_{L-1}].
            state_out_ref[:, l * H:(l + 1) * H] = h_new.astype(state_out_ref.dtype)
            state_out_ref[:, (L + l) * H:(L + l + 1) * H] = c_new.astype(
                state_out_ref.dtype)

            inp = h_new                      # input to the next layer

        # nn.Linear(hidden, 1) head: VPU multiply + lane reduction + SMEM bias.
        out = jnp.sum(inp * lin_w_ref[...], axis=-1, keepdims=True) + lin_b_ref[0, 0]
        out_ref[...] = out.astype(out_ref.dtype)

    return kernel


# ----------------------------------------------------------------------------
# One-time parameter preprocessing (hoisted out of the forward pass)
# ----------------------------------------------------------------------------
def prepare_params(cells, linear_w, linear_b):
    """cells: list of (W_ih(4H,in), W_hh(4H,H), b_ih(4H,), b_hh(4H,))."""
    H = cells[0][1].shape[1]
    w_rows, b_rows = [], []
    for (w_ih, w_hh, b_ih, b_hh) in cells:
        in_sz = w_ih.shape[1]
        assert in_sz <= H, "kernel assumes input_size <= hidden_size"
        w_x = w_ih.T                                          # (in_sz, 4H)
        if in_sz < H:                                         # pad K to H
            w_x = jnp.pad(w_x, ((0, H - in_sz), (0, 0)))
        w_rows.append(jnp.concatenate([w_x, w_hh.T], axis=0))  # (2H, 4H)
        b_rows.append((b_ih + b_hh).reshape(1, -1))             # (1, 4H)
    return {
        "w_all": jnp.stack(w_rows, 0),       # (L, 2H, 4H)
        "b_all": jnp.stack(b_rows, 0),       # (L, 1, 4H)
        "lin_w": linear_w.reshape(1, -1),    # (1, H)
        "lin_b": linear_b.reshape(1, 1),     # (1, 1) -> SMEM scalar
    }


# ----------------------------------------------------------------------------
# Forward wrapper: one fused pallas_call per forward
# ----------------------------------------------------------------------------
@jax.jit
def lstm_multilayer_cell_forward(prepared, x, hs, cs):
    """Mirrors LSTM_multilayer_cell.forward (dropout p=0.0 -> identity)."""
    L = len(hs)
    B, H = hs[0].shape
    in_size = x.shape[1]

    x_pad = x if in_size == H else jnp.pad(x, ((0, 0), (0, H - in_size)))
    state_in = jnp.stack([jnp.stack(hs, 0), jnp.stack(cs, 0)], 0)  # (2, L, B, H)

    kernel = _make_fused_kernel(L, H)
    vmem = pl.BlockSpec(memory_space=pltpu.MemorySpace.VMEM)
    smem = pl.BlockSpec(memory_space=pltpu.MemorySpace.SMEM)

    in_bytes = 4 * (x_pad.size + state_in.size + prepared["w_all"].size
                    + prepared["b_all"].size + prepared["lin_w"].size + 1)
    out_bytes = 4 * (B + B * 2 * L * H)
    cost = pl.CostEstimate(
        flops=4 * L * B * H * 4 * H + 2 * B * H,
        transcendentals=5 * L * B * H,
        bytes_accessed=in_bytes + out_bytes,
    )

    out, state_out = pl.pallas_call(
        kernel,
        out_shape=(
            jax.ShapeDtypeStruct((B, 1), jnp.float32),
            jax.ShapeDtypeStruct((B, 2 * L * H), jnp.float32),
        ),
        in_specs=[vmem, vmem, vmem, vmem, vmem, smem],
        out_specs=(vmem, vmem),
        cost_estimate=cost,
    )(x_pad, state_in, prepared["w_all"], prepared["b_all"],
      prepared["lin_w"], prepared["lin_b"])

    hs_new = [state_out[:, l * H:(l + 1) * H] for l in range(L)]
    cs_new = [state_out[:, (L + l) * H:(L + l + 1) * H] for l in range(L)]
    return out, hs_new, cs_new


# ----------------------------------------------------------------------------
# Pure-JAX reference (for a correctness check)
# ----------------------------------------------------------------------------
def _ref_cell(x, h, c, w_ih, w_hh, b_ih, b_hh):
    gates = x @ w_ih.T + b_ih + h @ w_hh.T + b_hh
    H = h.shape[-1]
    i = jax.nn.sigmoid(gates[:, :H])
    f = jax.nn.sigmoid(gates[:, H:2 * H])
    g = jnp.tanh(gates[:, 2 * H:3 * H])
    o = jax.nn.sigmoid(gates[:, 3 * H:])
    c_new = f * c + i * g
    return o * jnp.tanh(c_new), c_new


def _ref_forward(cells, linear_w, linear_b, x, hs, cs):
    hs = list(hs)
    cs = list(cs)
    hs[0], cs[0] = _ref_cell(x, hs[0], cs[0], *cells[0])
    for i in range(len(hs) - 1):
        hs[i + 1], cs[i + 1] = _ref_cell(hs[i], hs[i + 1], cs[i + 1],
                                         *cells[i + 1])
    out = hs[-1] @ linear_w.T + linear_b
    return out, hs, cs


# ----------------------------------------------------------------------------
# Main
# ----------------------------------------------------------------------------
if __name__ == "__main__":
    batch = 8
    input_size = 16
    hidden = 32
    num_layers = 3

    key = jax.random.PRNGKey(0)
    keys = iter(jax.random.split(key, 64))
    bound = 1.0 / np.sqrt(hidden)

    def uni(shape):
        return jax.random.uniform(next(keys), shape, jnp.float32, -bound, bound)

    cells = []
    for layer in range(num_layers):
        in_sz = input_size if layer == 0 else hidden
        cells.append((
            uni((4 * hidden, in_sz)),   # W_ih
            uni((4 * hidden, hidden)),  # W_hh
            uni((4 * hidden,)),         # b_ih
            uni((4 * hidden,)),         # b_hh
        ))
    linear_w = uni((1, hidden))
    linear_b = uni((1,))

    x = jax.random.normal(next(keys), (batch, input_size), jnp.float32)
    hs = [jax.random.normal(next(keys), (batch, hidden), jnp.float32)
          for _ in range(num_layers)]
    cs = [jax.random.normal(next(keys), (batch, hidden), jnp.float32)
          for _ in range(num_layers)]

    ref_out, ref_hs, ref_cs = _ref_forward(cells, linear_w, linear_b, x, hs, cs)

    prepared = prepare_params(cells, linear_w, linear_b)
    out, hs_new, cs_new = lstm_multilayer_cell_forward(prepared, x, hs, cs)
    jax.block_until_ready(out)
    jax.block_until_ready(hs_new)
    jax.block_until_ready(cs_new)

    np.testing.assert_allclose(np.asarray(out), np.asarray(ref_out),
                               rtol=2e-3, atol=2e-3)
    for a, b in zip(hs_new, ref_hs):
        np.testing.assert_allclose(np.asarray(a), np.asarray(b),
                                   rtol=2e-3, atol=2e-3)
    for a, b in zip(cs_new, ref_cs):
        np.testing.assert_allclose(np.asarray(a), np.asarray(b),
                                   rtol=2e-3, atol=2e-3)

    print("KERNEL_OK")
</pallas_src>

<mosaic_0001>
module attributes {stable_mosaic.version = 11 : i64} {
  func.func @kernel(%arg0: memref<8x32xf32, #tpu.memory_space<vmem>>, %arg1: memref<2x3x8x32xf32, #tpu.memory_space<vmem>>, %arg2: memref<3x64x128xf32, #tpu.memory_space<vmem>>, %arg3: memref<3x1x128xf32, #tpu.memory_space<vmem>>, %arg4: memref<1x32xf32, #tpu.memory_space<vmem>>, %arg5: memref<1x1xf32, #tpu.memory_space<smem>>, %arg6: memref<8x1xf32, #tpu.memory_space<vmem>>, %arg7: memref<8x192xf32, #tpu.memory_space<vmem>>) attributes {dimension_semantics = [], scalar_prefetch = 0 : i64, scratch_operands = 0 : i64, tpu.core_type = #tpu.core_type<tc>} {
    %c0 = arith.constant 0 : index
    %c0_0 = arith.constant 0 : index
    %0 = vector.load %arg0[%c0, %c0_0] : memref<8x32xf32, #tpu.memory_space<vmem>>, vector<8x32xf32>
    %1 = tpu.iota {dimensions = array<i32: 1>} : vector<8x128xi32>
    %c64_i32 = arith.constant 64 : i32
    %2 = vector.broadcast %c64_i32 : i32 to vector<8x128xi32>
    %3 = arith.cmpi sge, %1, %2 : vector<8x128xi32>
    %c96_i32 = arith.constant 96 : i32
    %4 = vector.broadcast %c96_i32 : i32 to vector<8x128xi32>
    %5 = arith.cmpi slt, %1, %4 : vector<8x128xi32>
    %6 = arith.andi %3, %5 : vector<8x128xi1>
    %cst = arith.constant 1.000000e+00 : f32
    %cst_1 = arith.constant 5.000000e-01 : f32
    %7 = vector.broadcast %cst : f32 to vector<8x128xf32>
    %8 = vector.broadcast %cst_1 : f32 to vector<8x128xf32>
    %9 = arith.select %6, %7, %8 : vector<8x128xi1>, vector<8x128xf32>
    %cst_2 = arith.constant 1.000000e+00 : f32
    %cst_3 = arith.constant 5.000000e-01 : f32
    %10 = vector.broadcast %cst_2 : f32 to vector<8x128xf32>
    %11 = vector.broadcast %cst_3 : f32 to vector<8x128xf32>
    %12 = arith.select %6, %10, %11 : vector<8x128xi1>, vector<8x128xf32>
    %cst_4 = arith.constant 0.000000e+00 : f32
    %cst_5 = arith.constant 5.000000e-01 : f32
    %13 = vector.broadcast %cst_4 : f32 to vector<8x128xf32>
    %14 = vector.broadcast %cst_5 : f32 to vector<8x128xf32>
    %15 = arith.select %6, %13, %14 : vector<8x128xi1>, vector<8x128xf32>
    %c0_6 = arith.constant 0 : index
    %c0_7 = arith.constant 0 : index
    %c0_8 = arith.constant 0 : index
    %c0_9 = arith.constant 0 : index
    %16 = vector.load %arg1[%c0_6, %c0_7, %c0_8, %c0_9] : memref<2x3x8x32xf32, #tpu.memory_space<vmem>>, vector<1x1x8x32xf32>
    %17 = vector.shape_cast %16 : vector<1x1x8x32xf32> to vector<8x32xf32>
    %c1 = arith.constant 1 : index
    %c0_10 = arith.constant 0 : index
    %c0_11 = arith.constant 0 : index
    %c0_12 = arith.constant 0 : index
    %18 = vector.load %arg1[%c1, %c0_10, %c0_11, %c0_12] : memref<2x3x8x32xf32, #tpu.memory_space<vmem>>, vector<1x1x8x32xf32>
    %19 = vector.shape_cast %18 : vector<1x1x8x32xf32> to vector<8x32xf32>
    %c0_13 = arith.constant 0 : index
    %c0_14 = arith.constant 0 : index
    %c0_15 = arith.constant 0 : index
    %20 = vector.load %arg2[%c0_13, %c0_14, %c0_15] : memref<3x64x128xf32, #tpu.memory_space<vmem>>, vector<1x64x128xf32>
    %21 = vector.shape_cast %20 : vector<1x64x128xf32> to vector<64x128xf32>
    %22 = vector.extract_strided_slice %21 {offsets = [0, 0], sizes = [32, 128], strides = [1, 1]} : vector<64x128xf32> to vector<32x128xf32>
    %cst_16 = arith.constant dense<0.000000e+00> : vector<8x128xf32>
    %23 = tpu.matmul %0, %22, %cst_16 {dimension_numbers = #tpu.dot_dimension_numbers<[1], [0], [0], [1], [0, 0, 1, 1], [], []>} : vector<8x32xf32>, vector<32x128xf32>, vector<8x128xf32> -> vector<8x128xf32>
    %24 = vector.extract_strided_slice %21 {offsets = [32, 0], sizes = [32, 128], strides = [1, 1]} : vector<64x128xf32> to vector<32x128xf32>
    %cst_17 = arith.constant dense<0.000000e+00> : vector<8x128xf32>
    %25 = tpu.matmul %17, %24, %cst_17 {dimension_numbers = #tpu.dot_dimension_numbers<[1], [0], [0], [1], [0, 0, 1, 1], [], []>} : vector<8x32xf32>, vector<32x128xf32>, vector<8x128xf32> -> vector<8x128xf32>
    %26 = arith.addf %23, %25 : vector<8x128xf32>
    %c0_18 = arith.constant 0 : index
    %c0_19 = arith.constant 0 : index
    %c0_20 = arith.constant 0 : index
    %27 = vector.load %arg3[%c0_18, %c0_19, %c0_20] : memref<3x1x128xf32, #tpu.memory_space<vmem>>, vector<1x1x128xf32>
    %28 = vector.shape_cast %27 : vector<1x1x128xf32> to vector<1x128xf32>
    %29 = vector.broadcast %28 : vector<1x128xf32> to vector<8x128xf32>
    %30 = arith.addf %26, %29 : vector<8x128xf32>
    %31 = arith.mulf %30, %9 : vector<8x128xf32>
    %32 = math.tanh %31 : vector<8x128xf32>
    %33 = arith.mulf %32, %12 : vector<8x128xf32>
    %34 = arith.addf %33, %15 : vector<8x128xf32>
    %35 = vector.extract_strided_slice %34 {offsets = [0, 0], sizes = [8, 32], strides = [1, 1]} : vector<8x128xf32> to vector<8x32xf32>
    %36 = vector.extract_strided_slice %34 {offsets = [0, 32], sizes = [8, 32], strides = [1, 1]} : vector<8x128xf32> to vector<8x32xf32>
    %37 = vector.extract_strided_slice %34 {offsets = [0, 64], sizes = [8, 32], strides = [1, 1]} : vector<8x128xf32> to vector<8x32xf32>
    %38 = vector.extract_strided_slice %34 {offsets = [0, 96], sizes = [8, 32], strides = [1, 1]} : vector<8x128xf32> to vector<8x32xf32>
    %39 = arith.mulf %36, %19 : vector<8x32xf32>
    %40 = arith.mulf %35, %37 : vector<8x32xf32>
    %41 = arith.addf %39, %40 : vector<8x32xf32>
    %42 = math.tanh %41 : vector<8x32xf32>
    %43 = arith.mulf %38, %42 : vector<8x32xf32>
    %c0_21 = arith.constant 0 : index
    %c0_22 = arith.constant 0 : index
    %44 = vector.load %arg7[%c0_21, %c0_22] : memref<8x192xf32, #tpu.memory_space<vmem>>, vector<8x32xf32>
    tpu.vector_store %arg7[%c0_21, %c0_22], %43 {strides = array<i32>} : memref<8x192xf32, #tpu.memory_space<vmem>>, vector<8x32xf32>,
    %c0_23 = arith.constant 0 : index
    %c96 = arith.constant 96 : index
    %45 = vector.load %arg7[%c0_23, %c96] : memref<8x192xf32, #tpu.memory_space<vmem>>, vector<8x32xf32>
    tpu.vector_store %arg7[%c0_23, %c96], %41 {strides = array<i32>} : memref<8x192xf32, #tpu.memory_space<vmem>>, vector<8x32xf32>,
    %c0_24 = arith.constant 0 : index
    %c1_25 = arith.constant 1 : index
    %c0_26 = arith.constant 0 : index
    %c0_27 = arith.constant 0 : index
    %46 = vector.load %arg1[%c0_24, %c1_25, %c0_26, %c0_27] : memref<2x3x8x32xf32, #tpu.memory_space<vmem>>, vector<1x1x8x32xf32>
    %47 = vector.shape_cast %46 : vector<1x1x8x32xf32> to vector<8x32xf32>
    %c1_28 = arith.constant 1 : index
    %c1_29 = arith.constant 1 : index
    %c0_30 = arith.constant 0 : index
    %c0_31 = arith.constant 0 : index
    %48 = vector.load %arg1[%c1_28, %c1_29, %c0_30, %c0_31] : memref<2x3x8x32xf32, #tpu.memory_space<vmem>>, vector<1x1x8x32xf32>
    %49 = vector.shape_cast %48 : vector<1x1x8x32xf32> to vector<8x32xf32>
    %c1_32 = arith.constant 1 : index
    %c0_33 = arith.constant 0 : index
    %c0_34 = arith.constant 0 : index
    %50 = vector.load %arg2[%c1_32, %c0_33, %c0_34] : memref<3x64x128xf32, #tpu.memory_space<vmem>>, vector<1x64x128xf32>
    %51 = vector.shape_cast %50 : vector<1x64x128xf32> to vector<64x128xf32>
    %52 = vector.extract_strided_slice %51 {offsets = [0, 0], sizes = [32, 128], strides = [1, 1]} : vector<64x128xf32> to vector<32x128xf32>
    %cst_35 = arith.constant dense<0.000000e+00> : vector<8x128xf32>
    %53 = tpu.matmul %43, %52, %cst_35 {dimension_numbers = #tpu.dot_dimension_numbers<[1], [0], [0], [1], [0, 0, 1, 1], [], []>} : vector<8x32xf32>, vector<32x128xf32>, vector<8x128xf32> -> vector<8x128xf32>
    %54 = vector.extract_strided_slice %51 {offsets = [32, 0], sizes = [32, 128], strides = [1, 1]} : vector<64x128xf32> to vector<32x128xf32>
    %cst_36 = arith.constant dense<0.000000e+00> : vector<8x128xf32>
    %55 = tpu.matmul %47, %54, %cst_36 {dimension_numbers = #tpu.dot_dimension_numbers<[1], [0], [0], [1], [0, 0, 1, 1], [], []>} : vector<8x32xf32>, vector<32x128xf32>, vector<8x128xf32> -> vector<8x128xf32>
    %56 = arith.addf %53, %55 : vector<8x128xf32>
    %c1_37 = arith.constant 1 : index
    %c0_38 = arith.constant 0 : index
    %c0_39 = arith.constant 0 : index
    %57 = vector.load %arg3[%c1_37, %c0_38, %c0_39] : memref<3x1x128xf32, #tpu.memory_space<vmem>>, vector<1x1x128xf32>
    %58 = vector.shape_cast %57 : vector<1x1x128xf32> to vector<1x128xf32>
    %59 = vector.broadcast %58 : vector<1x128xf32> to vector<8x128xf32>
    %60 = arith.addf %56, %59 : vector<8x128xf32>
    %61 = arith.mulf %60, %9 : vector<8x128xf32>
    %62 = math.tanh %61 : vector<8x128xf32>
    %63 = arith.mulf %62, %12 : vector<8x128xf32>
    %64 = arith.addf %63, %15 : vector<8x128xf32>
    %65 = vector.extract_strided_slice %64 {offsets = [0, 0], sizes = [8, 32], strides = [1, 1]} : vector<8x128xf32> to vector<8x32xf32>
    %66 = vector.extract_strided_slice %64 {offsets = [0, 32], sizes = [8, 32], strides = [1, 1]} : vector<8x128xf32> to vector<8x32xf32>
    %67 = vector.extract_strided_slice %64 {offsets = [0, 64], sizes = [8, 32], strides = [1, 1]} : vector<8x128xf32> to vector<8x32xf32>
    %68 = vector.extract_strided_slice %64 {offsets = [0, 96], sizes = [8, 32], strides = [1, 1]} : vector<8x128xf32> to vector<8x32xf32>
    %69 = arith.mulf %66, %49 : vector<8x32xf32>
    %70 = arith.mulf %65, %67 : vector<8x32xf32>
    %71 = arith.addf %69, %70 : vector<8x32xf32>
    %72 = math.tanh %71 : vector<8x32xf32>
    %73 = arith.mulf %68, %72 : vector<8x32xf32>
    %c0_40 = arith.constant 0 : index
    %c32 = arith.constant 32 : index
    %74 = vector.load %arg7[%c0_40, %c32] : memref<8x192xf32, #tpu.memory_space<vmem>>, vector<8x32xf32>
    tpu.vector_store %arg7[%c0_40, %c32], %73 {strides = array<i32>} : memref<8x192xf32, #tpu.memory_space<vmem>>, vector<8x32xf32>,
    %c0_41 = arith.constant 0 : index
    %c128 = arith.constant 128 : index
    %75 = vector.load %arg7[%c0_41, %c128] : memref<8x192xf32, #tpu.memory_space<vmem>>, vector<8x32xf32>
    tpu.vector_store %arg7[%c0_41, %c128], %71 {strides = array<i32>} : memref<8x192xf32, #tpu.memory_space<vmem>>, vector<8x32xf32>,
    %c0_42 = arith.constant 0 : index
    %c2 = arith.constant 2 : index
    %c0_43 = arith.constant 0 : index
    %c0_44 = arith.constant 0 : index
    %76 = vector.load %arg1[%c0_42, %c2, %c0_43, %c0_44] : memref<2x3x8x32xf32, #tpu.memory_space<vmem>>, vector<1x1x8x32xf32>
    %77 = vector.shape_cast %76 : vector<1x1x8x32xf32> to vector<8x32xf32>
    %c1_45 = arith.constant 1 : index
    %c2_46 = arith.constant 2 : index
    %c0_47 = arith.constant 0 : index
    %c0_48 = arith.constant 0 : index
    %78 = vector.load %arg1[%c1_45, %c2_46, %c0_47, %c0_48] : memref<2x3x8x32xf32, #tpu.memory_space<vmem>>, vector<1x1x8x32xf32>
    %79 = vector.shape_cast %78 : vector<1x1x8x32xf32> to vector<8x32xf32>
    %c2_49 = arith.constant 2 : index
    %c0_50 = arith.constant 0 : index
    %c0_51 = arith.constant 0 : index
    %80 = vector.load %arg2[%c2_49, %c0_50, %c0_51] : memref<3x64x128xf32, #tpu.memory_space<vmem>>, vector<1x64x128xf32>
    %81 = vector.shape_cast %80 : vector<1x64x128xf32> to vector<64x128xf32>
    %82 = vector.extract_strided_slice %81 {offsets = [0, 0], sizes = [32, 128], strides = [1, 1]} : vector<64x128xf32> to vector<32x128xf32>
    %cst_52 = arith.constant dense<0.000000e+00> : vector<8x128xf32>
    %83 = tpu.matmul %73, %82, %cst_52 {dimension_numbers = #tpu.dot_dimension_numbers<[1], [0], [0], [1], [0, 0, 1, 1], [], []>} : vector<8x32xf32>, vector<32x128xf32>, vector<8x128xf32> -> vector<8x128xf32>
    %84 = vector.extract_strided_slice %81 {offsets = [32, 0], sizes = [32, 128], strides = [1, 1]} : vector<64x128xf32> to vector<32x128xf32>
    %cst_53 = arith.constant dense<0.000000e+00> : vector<8x128xf32>
    %85 = tpu.matmul %77, %84, %cst_53 {dimension_numbers = #tpu.dot_dimension_numbers<[1], [0], [0], [1], [0, 0, 1, 1], [], []>} : vector<8x32xf32>, vector<32x128xf32>, vector<8x128xf32> -> vector<8x128xf32>
    %86 = arith.addf %83, %85 : vector<8x128xf32>
    %c2_54 = arith.constant 2 : index
    %c0_55 = arith.constant 0 : index
    %c0_56 = arith.constant 0 : index
    %87 = vector.load %arg3[%c2_54, %c0_55, %c0_56] : memref<3x1x128xf32, #tpu.memory_space<vmem>>, vector<1x1x128xf32>
    %88 = vector.shape_cast %87 : vector<1x1x128xf32> to vector<1x128xf32>
    %89 = vector.broadcast %88 : vector<1x128xf32> to vector<8x128xf32>
    %90 = arith.addf %86, %89 : vector<8x128xf32>
    %91 = arith.mulf %90, %9 : vector<8x128xf32>
    %92 = math.tanh %91 : vector<8x128xf32>
    %93 = arith.mulf %92, %12 : vector<8x128xf32>
    %94 = arith.addf %93, %15 : vector<8x128xf32>
    %95 = vector.extract_strided_slice %94 {offsets = [0, 0], sizes = [8, 32], strides = [1, 1]} : vector<8x128xf32> to vector<8x32xf32>
    %96 = vector.extract_strided_slice %94 {offsets = [0, 32], sizes = [8, 32], strides = [1, 1]} : vector<8x128xf32> to vector<8x32xf32>
    %97 = vector.extract_strided_slice %94 {offsets = [0, 64], sizes = [8, 32], strides = [1, 1]} : vector<8x128xf32> to vector<8x32xf32>
    %98 = vector.extract_strided_slice %94 {offsets = [0, 96], sizes = [8, 32], strides = [1, 1]} : vector<8x128xf32> to vector<8x32xf32>
    %99 = arith.mulf %96, %79 : vector<8x32xf32>
    %100 = arith.mulf %95, %97 : vector<8x32xf32>
    %101 = arith.addf %99, %100 : vector<8x32xf32>
    %102 = math.tanh %101 : vector<8x32xf32>
    %103 = arith.mulf %98, %102 : vector<8x32xf32>
    %c0_57 = arith.constant 0 : index
    %c64 = arith.constant 64 : index
    %104 = vector.load %arg7[%c0_57, %c64] : memref<8x192xf32, #tpu.memory_space<vmem>>, vector<8x32xf32>
    tpu.vector_store %arg7[%c0_57, %c64], %103 {strides = array<i32>} : memref<8x192xf32, #tpu.memory_space<vmem>>, vector<8x32xf32>,
    %c0_58 = arith.constant 0 : index
    %c160 = arith.constant 160 : index
    %105 = vector.load %arg7[%c0_58, %c160] : memref<8x192xf32, #tpu.memory_space<vmem>>, vector<8x32xf32>
    tpu.vector_store %arg7[%c0_58, %c160], %101 {strides = array<i32>} : memref<8x192xf32, #tpu.memory_space<vmem>>, vector<8x32xf32>,
    %c0_59 = arith.constant 0 : index
    %c0_60 = arith.constant 0 : index
    %106 = vector.load %arg4[%c0_59, %c0_60] : memref<1x32xf32, #tpu.memory_space<vmem>>, vector<1x32xf32>
    %107 = vector.broadcast %106 : vector<1x32xf32> to vector<8x32xf32>
    %108 = arith.mulf %103, %107 : vector<8x32xf32>
    %cst_61 = arith.constant dense<0.000000e+00> : vector<8xf32>
    %109 = vector.multi_reduction <add>, %108, %cst_61 [1] : vector<8x32xf32> to vector<8xf32>
    %110 = vector.shape_cast %109 : vector<8xf32> to vector<8x1xf32>
    %c0_62 = arith.constant 0 : index
    %c0_63 = arith.constant 0 : index
    %111 = memref.load %arg5[%c0_62, %c0_63] : memref<1x1xf32, #tpu.memory_space<smem>>
    %112 = vector.broadcast %111 : f32 to vector<8x1xf32>
    %113 = arith.addf %110, %112 : vector<8x1xf32>
    %c0_64 = arith.constant 0 : index
    %c0_65 = arith.constant 0 : index
    %114 = vector.load %arg6[%c0_64, %c0_65] : memref<8x1xf32, #tpu.memory_space<vmem>>, vector<8x1xf32>
    tpu.vector_store %arg6[%c0_64, %c0_65], %113 {strides = array<i32>} : memref<8x1xf32, #tpu.memory_space<vmem>>, vector<8x1xf32>,
    return
  }
}

</mosaic_0001>

<llo_original>
// kernel: lstm_multilayer_cell_forward.1
$region0: #{lstm_multilayer_cell_forward.1}
  #allocation0 [shape = 'u32[]', space=smem, size = 0x4, offset = 0x4, fixed_abs, tag = 'smem constant byte address 0x4 - core index']
  #allocation1 [shape = 'u32[72,128]{1,0:T(1,128)}', space=vmem, size = 0x9000, scoped, tag = 'internal scratch']
  #allocation2 [shape = 'f32[1,1]{1,0:T(1,128)S(6)}', space=smem, size = 0x200, scoped, tag = 'scoped memory for lstm_multilayer_cell_forward.1']
  %s0 = inlined_call_operand.vmem [shape: f32[8,32], index: 0, kind: input, shape index: {}]
  %s1 = inlined_call_operand.vmem [shape: f32[2,3,8,32], index: 1, kind: input, shape index: {}]
  %s2 = inlined_call_operand.vmem [shape: f32[3,64,128], index: 2, kind: input, shape index: {}]
  %s3 = inlined_call_operand.hbm [shape: f32[3,1,128], index: 3, kind: input, shape index: {}]
  %s4 = inlined_call_operand.hbm [shape: f32[1,32], index: 4, kind: input, shape index: {}]
  %s5 = inlined_call_operand.<no memory space> [shape: f32[1,1], index: 5, kind: input, shape index: {}]
  %s6 = inlined_call_operand.vmem [shape: f32[8,1], index: 6, kind: output, shape index: {0}]
  %s7 = inlined_call_operand.vmem [shape: f32[8,192], index: 7, kind: output, shape index: {1}]
  %8 = xla_tuple %s6, %s7
  %s9 = sld [smem:[#allocation0]]
  $region50: #{lstm_multilayer_cell_forward.1} parent=0
    _
  %s11 = ssub.s32 1, %s9
  %s12 = scalar_select 0, %s11, %s9
  %13 = sst [smem:[#allocation2]] %s5
  $region1: #{lstm_multilayer_cell_forward.1} parent=0
    #allocation3 [shape = 'u8[1536]{0}', space=vmem, size = 0x800, scoped, tag = 'input window, operand 3, single buffered']
    #allocation4 [shape = 's32[1]{0}', space=sflag, size = 0x4, scoped, tag = 'scoped memory for lstm_multilayer_cell_forward.1']
    #allocation5 [shape = 'u8[512]{0}', space=vmem, size = 0x400, scoped, tag = 'input window, operand 4, single buffered']
    #allocation6 [shape = 's32[1]{0}', space=sflag, size = 0x4, scoped, tag = 'scoped memory for lstm_multilayer_cell_forward.1']
    %14 = vsyncpa [#allocation4], 0
    %15 = vsyncpa [#allocation6], 0
    // Predicated region
    $region2: #{lstm_multilayer_cell_forward.1} parent=1 // pred_check
      _
    $region3: #{lstm_multilayer_cell_forward.1} parent=1 // pred_check_branch
      %17 = sbr.rel (0) target = $region5
    $region4: #{lstm_multilayer_cell_forward.1} parent=1 // pred_region
      _
    $region5: #{lstm_multilayer_cell_forward.1} parent=1 // pred_fallthru
      _
    // Predicated region
    $region6: #{lstm_multilayer_cell_forward.1} parent=1 // pred_check
      _
    $region7: #{lstm_multilayer_cell_forward.1} parent=1 // pred_check_branch
      %19 = sbr.rel (0) target = $region9
    $region8: #{lstm_multilayer_cell_forward.1} parent=1 // pred_region
      _
    $region9: #{lstm_multilayer_cell_forward.1} parent=1 // pred_fallthru
      _
    // Predicated region
    $region10: #{lstm_multilayer_cell_forward.1} parent=1 // pred_check
      _
    $region11: #{lstm_multilayer_cell_forward.1} parent=1 // pred_check_branch
      %21 = sbr.rel (0) target = $region13
    $region12: #{lstm_multilayer_cell_forward.1} parent=1 // pred_region
      _
    $region13: #{lstm_multilayer_cell_forward.1} parent=1 // pred_fallthru
      _
    // Predicated region
    $region14: #{lstm_multilayer_cell_forward.1} parent=1 // pred_check
      _
    $region15: #{lstm_multilayer_cell_forward.1} parent=1 // pred_check_branch
      %23 = sbr.rel (0) target = $region17
    $region16: #{lstm_multilayer_cell_forward.1} parent=1 // pred_region
      %25 = vsyncadd [#allocation4], 0
      %s26 = sshll.u32 %s3, 4
      %s27 = int_to_ptr.hbm [resolvable:$true] %s26
      %s28 = sshll.u32 [#allocation3], 4
      %s29 = int_to_ptr.vmem [resolvable:$true] %s28
      %34 = dma.hbm_to_vmem [thread:$0]  %s27, 48, %s29, [#allocation4], 16, 16, 1
    $region17: #{lstm_multilayer_cell_forward.1} parent=1 // pred_fallthru
      _
    // Predicated region
    $region18: #{lstm_multilayer_cell_forward.1} parent=1 // pred_check
      _
    $region19: #{lstm_multilayer_cell_forward.1} parent=1 // pred_check_branch
      %36 = sbr.rel (0) target = $region21
    $region20: #{lstm_multilayer_cell_forward.1} parent=1 // pred_region
      %38 = vsyncadd [#allocation6], 0
      %s40 = sshll.u32 %s4, 4
      %s41 = int_to_ptr.hbm [resolvable:$true] %s40
      %s42 = sshll.u32 [#allocation5], 4
      %s43 = int_to_ptr.vmem [resolvable:$true] %s42
      %45 = dma.hbm_to_vmem [thread:$0]  %s41, 16, %s43, [#allocation6]
    $region21: #{lstm_multilayer_cell_forward.1} parent=1 // pred_fallthru
      _
    // Predicated region
    $region22: #{lstm_multilayer_cell_forward.1} parent=1 // pred_check
      _
    $region23: #{lstm_multilayer_cell_forward.1} parent=1 // pred_check_branch
      %47 = sbr.rel (0) target = $region25
    $region24: #{lstm_multilayer_cell_forward.1} parent=1 // pred_region
      _
    $region25: #{lstm_multilayer_cell_forward.1} parent=1 // pred_fallthru
      _
    // Predicated region
    $region26: #{lstm_multilayer_cell_forward.1} parent=1 // pred_check
      _
    $region27: #{lstm_multilayer_cell_forward.1} parent=1 // pred_check_branch
      %49 = sbr.rel (0) target = $region29
    $region28: #{lstm_multilayer_cell_forward.1} parent=1 // pred_region
      %51 = dma.done [#allocation4], 48
    $region29: #{lstm_multilayer_cell_forward.1} parent=1 // pred_fallthru
      _
    // Predicated region
    $region30: #{lstm_multilayer_cell_forward.1} parent=1 // pred_check
      _
    $region31: #{lstm_multilayer_cell_forward.1} parent=1 // pred_check_branch
      %53 = sbr.rel (0) target = $region33
    $region32: #{lstm_multilayer_cell_forward.1} parent=1 // pred_region
      %55 = dma.done [#allocation6], 16
    $region33: #{lstm_multilayer_cell_forward.1} parent=1 // pred_fallthru
      _
    %v56 = vld [vmem:[%s0] sm:$0xff]
    %v57 = vlaneseq
    %v58 = vand.u32 %v57, 127
    %vm59 = vcmp.ge.s32.totalorder %v58, 64
    %vm60 = vcmp.lt.s32.totalorder %v58, 96
    %vm61 = vmand %vm59, %vm60
    %v62 = vsel %vm61, 1.0, 0.5
    %v63 = vsel %vm61, 0.0, 0.5
    %v64 = vld [vmem:[%s1] sm:$0xff]
    %s65 = scalar_lea.vmem %s1, 24
    %v66 = vld [vmem:[%s65] sm:$0xff]
    %v67 = vld [vmem:[%s2] sm:$0xff]
    %v68 = vld [vmem:[%s2 + $0x8] sm:$0xff]
    %v69 = vld [vmem:[%s2 + $0x10] sm:$0xff]
    %v70 = vld [vmem:[%s2 + $0x18] sm:$0xff]
    %v71 = vld [vmem:[%s2 + $0x20] sm:$0xff]
    %v72 = vld [vmem:[%s2 + $0x28] sm:$0xff]
    %v73 = vld [vmem:[%s2 + $0x30] sm:$0xff]
    %v74 = vld [vmem:[%s2 + $0x38] sm:$0xff]
    %vm75 = vcmask 261120
    %v77 = vsel %vm75, %v64, 0
    %79 = vmatpush.msra.mxu0 0.0
    %80 = vmatpush.msra.mxu0 0.0
    %81 = vmatpush.msra.mxu0 0.0
    %82 = vmatpush.msra.mxu0 0.0
    %83 = vmatpush.msra.mxu0 0.0
    %84 = vmatpush.msra.mxu0 0.0
    %85 = vmatpush.msra.mxu0 0.0
    %86 = vmatpush.msra.mxu0 0.0
    %87 = vmatpush.msra.mxu0 0.0
    %88 = vmatpush.msra.mxu0 0.0
    %89 = vmatpush.msra.mxu0 0.0
    %90 = vmatpush.msra.mxu0 0.0
    %91 = vmatpush.msra.mxu0 %v74
    %92 = vmatpush.msra.mxu0 %v73
    %93 = vmatpush.msra.mxu0 %v72
    %94 = vmatpush.msra.mxu0 %v71
    %95 = vmatmul.f32.gmra.mxu0 %v77
    %v96 = vpop.f32.mrf.mxu0
    %v97 = vadd.f32 0.0, %v96
    %98 = vdwg.mxu0
    %v100 = vsel %vm75, %v56, 0
    %102 = vmatpush.msra.mxu0 0.0
    %103 = vmatpush.msra.mxu0 0.0
    %104 = vmatpush.msra.mxu0 0.0
    %105 = vmatpush.msra.mxu0 0.0
    %106 = vmatpush.msra.mxu0 0.0
    %107 = vmatpush.msra.mxu0 0.0
    %108 = vmatpush.msra.mxu0 0.0
    %109 = vmatpush.msra.mxu0 0.0
    %110 = vmatpush.msra.mxu0 0.0
    %111 = vmatpush.msra.mxu0 0.0
    %112 = vmatpush.msra.mxu0 0.0
    %113 = vmatpush.msra.mxu0 0.0
    %114 = vmatpush.msra.mxu0 %v70
    %115 = vmatpush.msra.mxu0 %v69
    %116 = vmatpush.msra.mxu0 %v68
    %117 = vmatpush.msra.mxu0 %v67
    %118 = vmatmul.f32.gmra.mxu0 %v100
    %v119 = vpop.f32.mrf.mxu0
    %v120 = vadd.f32 %v97, %v119
    %121 = vdwg.mxu0
    %v122 = vld [vmem:[#allocation3] sm:$0x1]
    %v124 = vperm.slane %v122, 0
    %v126 = vadd.f32 %v120, %v124
    %v127 = vmul.f32 %v126, %v62
    %v128 = vtanh.pop %v127
    %v129 = vmul.f32 %v128, %v62
    %v130 = vadd.f32 %v129, %v63
    %132 = vrot.lane.b32.xlu0 %v66, 32
    %v133 = vpop.permute.xlu0 %132
    %v135 = vmul.f32 %v130, %v133
    %137 = vrot.lane.b32.xlu0 %v130, 64
    %v138 = vpop.permute.xlu0 %137
    %v140 = vmul.f32 %v130, %v138
    %142 = vrot.lane.b32.xlu0 %v140, 32
    %v143 = vpop.permute.xlu0 %142
    %v145 = vadd.f32 %v135, %v143
    %v146 = vtanh.pop %v145
    %148 = vrot.lane.b32.xlu0 %v146, 64
    %v149 = vpop.permute.xlu0 %148
    %v151 = vmul.f32 %v130, %v149
    %153 = vrot.lane.b32.xlu0 %v151, 32
    %v154 = vpop.permute.xlu0 %153
    %156 = vst.msk [vmem:[%s7] sm:$0xff] %vm75, %v154
    %158 = vrot.lane.b32.xlu0 %v145, 64
    %v159 = vpop.permute.xlu0 %158
    %vm161 = vcmask 1048320
    %162 = vst.msk [vmem:[%s7] sm:$0xff] %vm161, %v159
    %s163 = scalar_lea.vmem %s1, 8
    %v164 = vld [vmem:[%s163] sm:$0xff]
    %s165 = scalar_lea.vmem %s1, 32
    %v166 = vld [vmem:[%s165] sm:$0xff]
    %s167 = scalar_lea.vmem %s2, 64
    %v168 = vld [vmem:[%s167] sm:$0xff]
    %v169 = vld [vmem:[%s167 + $0x8] sm:$0xff]
    %v170 = vld [vmem:[%s167 + $0x10] sm:$0xff]
    %v171 = vld [vmem:[%s167 + $0x18] sm:$0xff]
    %v172 = vld [vmem:[%s167 + $0x20] sm:$0xff]
    %v173 = vld [vmem:[%s167 + $0x28] sm:$0xff]
    %v174 = vld [vmem:[%s167 + $0x30] sm:$0xff]
    %v175 = vld [vmem:[%s167 + $0x38] sm:$0xff]
    %v177 = vsel %vm75, %v164, 0
    %179 = vmatpush.msra.mxu0 0.0
    %180 = vmatpush.msra.mxu0 0.0
    %181 = vmatpush.msra.mxu0 0.0
    %182 = vmatpush.msra.mxu0 0.0
    %183 = vmatpush.msra.mxu0 0.0
    %184 = vmatpush.msra.mxu0 0.0
    %185 = vmatpush.msra.mxu0 0.0
    %186 = vmatpush.msra.mxu0 0.0
    %187 = vmatpush.msra.mxu0 0.0
    %188 = vmatpush.msra.mxu0 0.0
    %189 = vmatpush.msra.mxu0 0.0
    %190 = vmatpush.msra.mxu0 0.0
    %191 = vmatpush.msra.mxu0 %v175
    %192 = vmatpush.msra.mxu0 %v174
    %193 = vmatpush.msra.mxu0 %v173
    %194 = vmatpush.msra.mxu0 %v172
    %195 = vmatmul.f32.gmra.mxu0 %v177
    %v196 = vpop.f32.mrf.mxu0
    %v197 = vadd.f32 0.0, %v196
    %198 = vdwg.mxu0
    %v199 = vsel %vm75, %v154, 0
    %201 = vmatpush.msra.mxu0 0.0
    %202 = vmatpush.msra.mxu0 0.0
    %203 = vmatpush.msra.mxu0 0.0
    %204 = vmatpush.msra.mxu0 0.0
    %205 = vmatpush.msra.mxu0 0.0
    %206 = vmatpush.msra.mxu0 0.0
    %207 = vmatpush.msra.mxu0 0.0
    %208 = vmatpush.msra.mxu0 0.0
    %209 = vmatpush.msra.mxu0 0.0
    %210 = vmatpush.msra.mxu0 0.0
    %211 = vmatpush.msra.mxu0 0.0
    %212 = vmatpush.msra.mxu0 0.0
    %213 = vmatpush.msra.mxu0 %v171
    %214 = vmatpush.msra.mxu0 %v170
    %215 = vmatpush.msra.mxu0 %v169
    %216 = vmatpush.msra.mxu0 %v168
    %217 = vmatmul.f32.gmra.mxu0 %v199
    %v218 = vpop.f32.mrf.mxu0
    %v219 = vadd.f32 %v197, %v218
    %220 = vdwg.mxu0
    %s221 = scalar_lea.vmem [#allocation3], 1
    %v222 = vld [vmem:[%s221] sm:$0x1]
    %v224 = vperm.slane %v222, 0
    %v226 = vadd.f32 %v219, %v224
    %v227 = vmul.f32 %v226, %v62
    %v228 = vtanh.pop %v227
    %v229 = vmul.f32 %v228, %v62
    %v230 = vadd.f32 %v229, %v63
    %232 = vrot.lane.b32.xlu0 %v166, 32
    %v233 = vpop.permute.xlu0 %232
    %v235 = vmul.f32 %v230, %v233
    %237 = vrot.lane.b32.xlu0 %v230, 64
    %v238 = vpop.permute.xlu0 %237
    %v240 = vmul.f32 %v230, %v238
    %242 = vrot.lane.b32.xlu0 %v240, 32
    %v243 = vpop.permute.xlu0 %242
    %v245 = vadd.f32 %v235, %v243
    %v246 = vtanh.pop %v245
    %248 = vrot.lane.b32.xlu0 %v246, 64
    %v249 = vpop.permute.xlu0 %248
    %v251 = vmul.f32 %v230, %v249
    %253 = vrot.lane.b32.xlu0 %v251, 64
    %v254 = vpop.permute.xlu0 %253
    %vm256 = vcmask 523520
    %257 = vst.msk [vmem:[%s7] sm:$0xff] %vm256, %v254
    %259 = vrot.lane.b32.xlu0 %v245, 96
    %v260 = vpop.permute.xlu0 %259
    %262 = vst.msk [vmem:[%s7 + $0x8] sm:$0xff] %vm75, %v260
    %s263 = scalar_lea.vmem %s1, 16
    %v264 = vld [vmem:[%s263] sm:$0xff]
    %s265 = scalar_lea.vmem %s1, 40
    %v266 = vld [vmem:[%s265] sm:$0xff]
    %s267 = scalar_lea.vmem %s2, 128
    %v268 = vld [vmem:[%s267] sm:$0xff]
    %v269 = vld [vmem:[%s267 + $0x8] sm:$0xff]
    %v270 = vld [vmem:[%s267 + $0x10] sm:$0xff]
    %v271 = vld [vmem:[%s267 + $0x18] sm:$0xff]
    %v272 = vld [vmem:[%s267 + $0x20] sm:$0xff]
    %v273 = vld [vmem:[%s267 + $0x28] sm:$0xff]
    %v274 = vld [vmem:[%s267 + $0x30] sm:$0xff]
    %v275 = vld [vmem:[%s267 + $0x38] sm:$0xff]
    %v277 = vsel %vm75, %v264, 0
    %279 = vmatpush.msra.mxu0 0.0
    %280 = vmatpush.msra.mxu0 0.0
    %281 = vmatpush.msra.mxu0 0.0
    %282 = vmatpush.msra.mxu0 0.0
    %283 = vmatpush.msra.mxu0 0.0
    %284 = vmatpush.msra.mxu0 0.0
    %285 = vmatpush.msra.mxu0 0.0
    %286 = vmatpush.msra.mxu0 0.0
    %287 = vmatpush.msra.mxu0 0.0
    %288 = vmatpush.msra.mxu0 0.0
    %289 = vmatpush.msra.mxu0 0.0
    %290 = vmatpush.msra.mxu0 0.0
    %291 = vmatpush.msra.mxu0 %v275
    %292 = vmatpush.msra.mxu0 %v274
    %293 = vmatpush.msra.mxu0 %v273
    %294 = vmatpush.msra.mxu0 %v272
    %295 = vmatmul.f32.gmra.mxu0 %v277
    %v296 = vpop.f32.mrf.mxu0
    %v297 = vadd.f32 0.0, %v296
    %298 = vdwg.mxu0
    %299 = vrot.lane.b32.xlu0 %v251, 32
    %v300 = vpop.permute.xlu0 %299
    %v301 = vsel %vm75, %v300, 0
    %303 = vmatpush.msra.mxu0 0.0
    %304 = vmatpush.msra.mxu0 0.0
    %305 = vmatpush.msra.mxu0 0.0
    %306 = vmatpush.msra.mxu0 0.0
    %307 = vmatpush.msra.mxu0 0.0
    %308 = vmatpush.msra.mxu0 0.0
    %309 = vmatpush.msra.mxu0 0.0
    %310 = vmatpush.msra.mxu0 0.0
    %311 = vmatpush.msra.mxu0 0.0
    %312 = vmatpush.msra.mxu0 0.0
    %313 = vmatpush.msra.mxu0 0.0
    %314 = vmatpush.msra.mxu0 0.0
    %315 = vmatpush.msra.mxu0 %v271
    %316 = vmatpush.msra.mxu0 %v270
    %317 = vmatpush.msra.mxu0 %v269
    %318 = vmatpush.msra.mxu0 %v268
    %319 = vmatmul.f32.gmra.mxu0 %v301
    %v320 = vpop.f32.mrf.mxu0
    %v321 = vadd.f32 %v297, %v320
    %322 = vdwg.mxu0
    %s323 = scalar_lea.vmem [#allocation3], 2
    %v324 = vld [vmem:[%s323] sm:$0x1]
    %v326 = vperm.slane %v324, 0
    %v328 = vadd.f32 %v321, %v326
    %v329 = vmul.f32 %v328, %v62
    %v330 = vtanh.pop %v329
    %v331 = vmul.f32 %v330, %v62
    %v332 = vadd.f32 %v331, %v63
    %334 = vrot.lane.b32.xlu0 %v266, 32
    %v335 = vpop.permute.xlu0 %334
    %v337 = vmul.f32 %v332, %v335
    %339 = vrot.lane.b32.xlu0 %v332, 64
    %v340 = vpop.permute.xlu0 %339
    %v342 = vmul.f32 %v332, %v340
    %344 = vrot.lane.b32.xlu0 %v342, 32
    %v345 = vpop.permute.xlu0 %344
    %v347 = vadd.f32 %v337, %v345
    %v348 = vtanh.pop %v347
    %350 = vrot.lane.b32.xlu0 %v348, 64
    %v351 = vpop.permute.xlu0 %350
    %v353 = vmul.f32 %v332, %v351
    %355 = vrot.lane.b32.xlu0 %v353, 96
    %v356 = vpop.permute.xlu0 %355
    %vm358 = vcmask 785920
    %359 = vst.msk [vmem:[%s7] sm:$0xff] %vm358, %v356
    %360 = vst.msk [vmem:[%s7 + $0x8] sm:$0xff] %vm256, %v347
    %v361 = vld [vmem:[#allocation5] sm:$0x1]
    %v363 = vperm.slane %v361, 0
    %364 = vrot.lane.b32.xlu0 %v363, 96
    %v365 = vpop.permute.xlu0 %364
    %v367 = vmul.f32 %v353, %v365
    %369 = vrot.lane.b32.xlu0 %v367, 32
    %v370 = vpop.permute.xlu0 %369
    %v372 = vsel %vm75, %v370, 0.0
    %373 = vadd.xlane.f32.xlu0 %v372
    %v374 = vpop.xlane.xlu0 %373
    %s375 = sld [smem:[#allocation2]]
    %v376 = vstv %s375
    %v377 = vadd.f32 %v374, %v376
    %vm378 = vcmask 7168
    %379 = vst.msk [vmem:[%s6] sm:$0xff] %vm378, %v377
    // Predicated region
    $region34: #{lstm_multilayer_cell_forward.1} parent=1 // pred_check
      _
    $region35: #{lstm_multilayer_cell_forward.1} parent=1 // pred_check_branch
      %381 = sbr.rel (0) target = $region37
    $region36: #{lstm_multilayer_cell_forward.1} parent=1 // pred_region
      _
    $region37: #{lstm_multilayer_cell_forward.1} parent=1 // pred_fallthru
      _
    // Predicated region
    $region38: #{lstm_multilayer_cell_forward.1} parent=1 // pred_check
      _
    $region39: #{lstm_multilayer_cell_forward.1} parent=1 // pred_check_branch
      %383 = sbr.rel (0) target = $region41
    $region40: #{lstm_multilayer_cell_forward.1} parent=1 // pred_region
      _
    $region41: #{lstm_multilayer_cell_forward.1} parent=1 // pred_fallthru
      _
    // Predicated region
    $region42: #{lstm_multilayer_cell_forward.1} parent=1 // pred_check
      _
    $region43: #{lstm_multilayer_cell_forward.1} parent=1 // pred_check_branch
      %385 = sbr.rel (0) target = $region45
    $region44: #{lstm_multilayer_cell_forward.1} parent=1 // pred_region
      _
    $region45: #{lstm_multilayer_cell_forward.1} parent=1 // pred_fallthru
      _
    // Predicated region
    $region46: #{lstm_multilayer_cell_forward.1} parent=1 // pred_check
      _
    $region47: #{lstm_multilayer_cell_forward.1} parent=1 // pred_check_branch
      %387 = sbr.rel (0) target = $region49
    $region48: #{lstm_multilayer_cell_forward.1} parent=1 // pred_region
      _
    $region49: #{lstm_multilayer_cell_forward.1} parent=1 // pred_fallthru
      _
    %388 = vsyncpa [#allocation4], 1
    %389 = vsyncpa [#allocation6], 1

</llo_original>
